<compile_context>
chip_gen: v6e
topology: v6e:2x2x1
jax: 0.10.0
libtpu: 0.0.40
codegen_flags: <defaults>
</compile_context>

<pallas_src>
import jax
import jax.numpy as jnp
from jax.experimental import pallas as pl
from jax.experimental.pallas import tpu as pltpu

# ----------------------------------------------------------------------------
# Hyperparameters (the synthetic `params` object)
# ----------------------------------------------------------------------------
VOCAB = 50
TEXT_DIM = 32           # params.text_dim == conv in_channels
OUT_CHANNELS = 16       # params.out_channels
# torch.cat over channels requires equal pooled lengths -> k2 = k1+1, k3 = k1+2
K1, K2, K3 = 3, 4, 5    # params.kernel_{1,2,3}_size
HIDDEN = 32             # params.text_cnn_hidden_dim
OUT_DIM = 4             # params.output_dim
DROPOUT = 0.0           # params.dropout (identity)
SEQ_LEN = 16
BATCH = 2
NEG_SLOPE = 0.01        # F.leaky_relu default

CAT = 3 * OUT_CHANNELS  # 48 concatenated conv channels
VOCAB_PAD = 64          # vocab rounded up so the one-hot matmul K dim is aligned

# Packed-parameter row layout (all section starts are multiples of 8 sublanes,
# lane width = CAT = 48):
EMB_R0 = 0                              # (VOCAB_PAD, TEXT_DIM)  embedding table
CONV_R0 = EMB_R0 + VOCAB_PAD            # 64:  K3 taps x (TEXT_DIM, CAT) fused conv w
BIAS_R0 = CONV_R0 + K3 * TEXT_DIM       # 224: row0 conv bias(48), row1 fb1(32), row2 fb2(4)
FW1_R0 = BIAS_R0 + 8                    # 232: (CAT, HIDDEN) fc1 weight
FW2_R0 = FW1_R0 + CAT                   # 280: (HIDDEN, OUT_DIM) fc2 weight
PARAM_ROWS = FW2_R0 + HIDDEN            # 312 rows x 48 lanes (~58 KB fp32)


# ----------------------------------------------------------------------------
# Pallas kernel: embedding + fused 3-branch conv1d + leaky_relu + max + 2 FC
# Single invocation, whole batch resident in VMEM.
# ----------------------------------------------------------------------------
def _text_cnn_kernel(ids_ref, p_ref, out_ref):
    B = out_ref.shape[0]
    BL = ids_ref.shape[0]
    L = BL // B
    D = TEXT_DIM
    O = OUT_CHANNELS

    # ---- embedding lookup as one-hot @ table (exact: table row 0 is zeroed for
    #      padding_idx and pre-renormalized for max_norm in the wrapper).
    ids = ids_ref[...]                                                # (BL, 1) int32
    hot = ids == jax.lax.broadcasted_iota(jnp.int32, (BL, VOCAB_PAD), 1)
    x = jnp.dot(hot.astype(jnp.float32),
                p_ref[EMB_R0:EMB_R0 + VOCAB_PAD, 0:D],
                preferred_element_type=jnp.float32)                   # (BL, D)

    # ---- three Conv1d branches fused into one (D, 3*O) weight per tap.  The
    #      K3=5 time taps are realized with sublane rolls, so every MXU operand
    #      is a full, aligned tile.  xk[r] = x[(r + k) mod BL].
    acc = jnp.zeros((BL, CAT), jnp.float32)
    for k in range(K3):                                               # static unroll
        xk = x if k == 0 else pltpu.roll(x, shift=BL - k, axis=0)
        acc = acc + jnp.dot(xk,
                            p_ref[CONV_R0 + k * D:CONV_R0 + (k + 1) * D, :],
                            preferred_element_type=jnp.float32)
    acc = acc + p_ref[BIAS_R0:BIAS_R0 + 1, :]                         # conv biases (1, 48)
    act = jnp.where(acc > 0, acc, NEG_SLOPE * acc)                    # leaky_relu

    # ---- mask rows whose window runs off the end of an utterance (this also
    #      kills the roll wrap-around rows), then global max over time.
    #      max_pool1d(kernel=p, stride=1) + global pool == one global max.
    act = act.reshape(B, L, CAT)
    t = jax.lax.broadcasted_iota(jnp.int32, (B, L, CAT), 1)
    c = jax.lax.broadcasted_iota(jnp.int32, (B, L, CAT), 2)
    last_valid = jnp.where(c < O, L - K1, jnp.where(c < 2 * O, L - K2, L - K3))
    feats = jnp.max(jnp.where(t <= last_valid, act, -jnp.inf), axis=1)  # (B, 48)

    # ---- fc1 (tanh) and fc2 (relu); dropout p=0.0 is the identity.
    # TODO(synk): nonzero dropout would need in-kernel PRNG (pltpu.prng_*).
    h = jnp.tanh(jnp.dot(feats, p_ref[FW1_R0:FW1_R0 + CAT, 0:HIDDEN],
                         preferred_element_type=jnp.float32)
                 + p_ref[BIAS_R0 + 1:BIAS_R0 + 2, 0:HIDDEN])          # (B, H)
    out = (jnp.dot(h, p_ref[FW2_R0:FW2_R0 + HIDDEN, 0:OUT_DIM],
                   preferred_element_type=jnp.float32)
           + p_ref[BIAS_R0 + 2:BIAS_R0 + 3, 0:OUT_DIM])
    out_ref[...] = jnp.maximum(out, 0.0)                              # relu, (B, OUT_DIM)


# ----------------------------------------------------------------------------
# Wrapper: single pallas_call, no grid, whole arrays resident in VMEM.
# ----------------------------------------------------------------------------
def text_only_cnn_forward(text_ids, packed_params):
    B, L = text_ids.shape
    ids2d = text_ids.reshape(B * L, 1).astype(jnp.int32)
    out = pl.pallas_call(
        _text_cnn_kernel,
        out_shape=jax.ShapeDtypeStruct((B, OUT_DIM), jnp.float32),
    )(ids2d, packed_params)
    # torch: output.squeeze(dim=1) -- no-op because OUT_DIM != 1
    return out


# ----------------------------------------------------------------------------
# Parameter construction + packing into one fp32 buffer
# ----------------------------------------------------------------------------
def pack_params(emb, w1, b1, w2, b2, w3, b3, fw1, fb1, fw2, fb2):
    O = OUT_CHANNELS
    p = jnp.zeros((PARAM_ROWS, CAT), jnp.float32)
    p = p.at[EMB_R0:EMB_R0 + VOCAB, 0:TEXT_DIM].set(emb)
    # fused conv weight: zero-pad the K1/K2 branches to K3 taps, concat channels
    wcat = jnp.zeros((K3, TEXT_DIM, CAT), jnp.float32)
    wcat = wcat.at[:K1, :, 0:O].set(w1)
    wcat = wcat.at[:K2, :, O:2 * O].set(w2)
    wcat = wcat.at[:K3, :, 2 * O:3 * O].set(w3)
    p = p.at[CONV_R0:CONV_R0 + K3 * TEXT_DIM, :].set(wcat.reshape(K3 * TEXT_DIM, CAT))
    p = p.at[BIAS_R0, :].set(jnp.concatenate([b1, b2, b3], axis=1)[0])
    p = p.at[BIAS_R0 + 1, 0:HIDDEN].set(fb1[0])
    p = p.at[BIAS_R0 + 2, 0:OUT_DIM].set(fb2[0])
    p = p.at[FW1_R0:FW1_R0 + CAT, 0:HIDDEN].set(fw1)
    p = p.at[FW2_R0:FW2_R0 + HIDDEN, 0:OUT_DIM].set(fw2)
    return p


def make_params(key):
    ks = jax.random.split(key, 11)

    # Embedding(num_embeddings, text_dim, padding_idx=0, max_norm=1.0)
    emb = 0.5 * jax.random.normal(ks[0], (VOCAB, TEXT_DIM), jnp.float32)
    norms = jnp.linalg.norm(emb, axis=1, keepdims=True)
    emb = emb * jnp.minimum(1.0, 1.0 / jnp.maximum(norms, 1e-7))   # max_norm=1.0
    emb = emb.at[0].set(0.0)                                        # padding_idx=0

    def conv_w(k, ksize):
        # PyTorch Conv1d weight is (O, C, K); we use (K, C, O).
        w = 0.1 * jax.random.normal(k, (OUT_CHANNELS, TEXT_DIM, ksize), jnp.float32)
        return jnp.transpose(w, (2, 1, 0))

    w1 = conv_w(ks[1], K1)
    b1 = 0.1 * jax.random.normal(ks[2], (1, OUT_CHANNELS), jnp.float32)
    w2 = conv_w(ks[3], K2)
    b2 = 0.1 * jax.random.normal(ks[4], (1, OUT_CHANNELS), jnp.float32)
    w3 = conv_w(ks[5], K3)
    b3 = 0.1 * jax.random.normal(ks[6], (1, OUT_CHANNELS), jnp.float32)

    # fc1: Linear(3*O, HIDDEN) passed transposed; fc2: Linear(HIDDEN, OUT_DIM)
    fw1 = 0.1 * jax.random.normal(ks[7], (CAT, HIDDEN), jnp.float32)
    fb1 = 0.1 * jax.random.normal(ks[8], (1, HIDDEN), jnp.float32)
    fw2 = 0.1 * jax.random.normal(ks[9], (HIDDEN, OUT_DIM), jnp.float32)
    fb2 = 0.1 * jax.random.normal(ks[10], (1, OUT_DIM), jnp.float32)

    raw = (emb, w1, b1, w2, b2, w3, b3, fw1, fb1, fw2, fb2)
    return raw, pack_params(*raw)


# ----------------------------------------------------------------------------
# Pure-JAX reference (mirrors the PyTorch forward) for a correctness check
# ----------------------------------------------------------------------------
def _reference_forward(text_ids, emb, w1, b1, w2, b2, w3, b3, fw1, fb1, fw2, fb2):
    hi = jax.lax.Precision.HIGHEST
    x = emb[text_ids]                                           # (B, L, D) gather

    def branch(w, b, ks):
        lc = SEQ_LEN - ks + 1
        cols = []
        for t in range(lc):
            v = b
            for k in range(ks):
                v = v + jnp.dot(x[:, t + k, :], w[k], precision=hi)
            cols.append(v)                                      # (B, O)
        conv = jnp.stack(cols, axis=1)                          # (B, lc, O)
        act = jnp.where(conv > 0, conv, NEG_SLOPE * conv)       # leaky_relu
        return jnp.max(act, axis=1)   # max_pool1d(stride=1) + global max == global max

    feats = jnp.concatenate(
        [branch(w1, b1, K1), branch(w2, b2, K2), branch(w3, b3, K3)], axis=1)
    h = jnp.tanh(jnp.dot(feats, fw1, precision=hi) + fb1)
    return jnp.maximum(jnp.dot(h, fw2, precision=hi) + fb2, 0.0)


if __name__ == "__main__":
    key = jax.random.PRNGKey(0)
    k_param, k_text = jax.random.split(key)

    raw_params, packed_params = make_params(k_param)
    text_input = jax.random.randint(k_text, (BATCH, SEQ_LEN), 0, VOCAB, jnp.int32)

    out = jax.block_until_ready(text_only_cnn_forward(text_input, packed_params))

    assert out.shape == (BATCH, OUT_DIM)
    assert bool(jnp.all(jnp.isfinite(out)))
    assert bool(jnp.all(out >= 0.0))                   # final relu

    ref = jax.block_until_ready(_reference_forward(text_input, *raw_params))
    assert jnp.allclose(out, ref, atol=1e-2, rtol=1e-2), (out, ref)

    print("KERNEL_OK")
</pallas_src>

<mosaic_0001>
module attributes {stable_mosaic.version = 11 : i64} {
  func.func @_text_cnn_kernel(%arg0: memref<32x1xi32, #tpu.memory_space<vmem>>, %arg1: memref<312x48xf32, #tpu.memory_space<vmem>>, %arg2: memref<2x4xf32, #tpu.memory_space<vmem>>) attributes {dimension_semantics = [], scalar_prefetch = 0 : i64, scratch_operands = 0 : i64, tpu.core_type = #tpu.core_type<tc>} {
    %c0 = arith.constant 0 : index
    %c0_0 = arith.constant 0 : index
    %0 = vector.load %arg0[%c0, %c0_0] : memref<32x1xi32, #tpu.memory_space<vmem>>, vector<32x1xi32>
    %1 = tpu.iota {dimensions = array<i32: 1>} : vector<32x64xi32>
    %2 = vector.broadcast %0 : vector<32x1xi32> to vector<32x64xi32>
    %3 = arith.cmpi eq, %2, %1 : vector<32x64xi32>
    %4 = arith.extui %3 : vector<32x64xi1> to vector<32x64xi32>
    %5 = arith.sitofp %4 : vector<32x64xi32> to vector<32x64xf32>
    %c0_1 = arith.constant 0 : index
    %c0_2 = arith.constant 0 : index
    %6 = vector.load %arg1[%c0_1, %c0_2] : memref<312x48xf32, #tpu.memory_space<vmem>>, vector<64x32xf32>
    %cst = arith.constant dense<0.000000e+00> : vector<32x32xf32>
    %7 = tpu.matmul %5, %6, %cst {dimension_numbers = #tpu.dot_dimension_numbers<[1], [0], [0], [1], [0, 0, 1, 1], [], []>} : vector<32x64xf32>, vector<64x32xf32>, vector<32x32xf32> -> vector<32x32xf32>
    %cst_3 = arith.constant 0.000000e+00 : f32
    %8 = vector.broadcast %cst_3 : f32 to vector<32x48xf32>
    %c64 = arith.constant 64 : index
    %c0_4 = arith.constant 0 : index
    %9 = vector.load %arg1[%c64, %c0_4] : memref<312x48xf32, #tpu.memory_space<vmem>>, vector<32x48xf32>
    %cst_5 = arith.constant dense<0.000000e+00> : vector<32x48xf32>
    %10 = tpu.matmul %7, %9, %cst_5 {dimension_numbers = #tpu.dot_dimension_numbers<[1], [0], [0], [1], [0, 0, 1, 1], [], []>} : vector<32x32xf32>, vector<32x48xf32>, vector<32x48xf32> -> vector<32x48xf32>
    %11 = arith.addf %8, %10 : vector<32x48xf32>
    %c31_i32 = arith.constant 31 : i32
    %12 = tpu.dynamic_rotate %7 by %c31_i32 dim 0 : vector<32x32xf32>, i32 -> vector<32x32xf32>
    %c96 = arith.constant 96 : index
    %c0_6 = arith.constant 0 : index
    %13 = vector.load %arg1[%c96, %c0_6] : memref<312x48xf32, #tpu.memory_space<vmem>>, vector<32x48xf32>
    %cst_7 = arith.constant dense<0.000000e+00> : vector<32x48xf32>
    %14 = tpu.matmul %12, %13, %cst_7 {dimension_numbers = #tpu.dot_dimension_numbers<[1], [0], [0], [1], [0, 0, 1, 1], [], []>} : vector<32x32xf32>, vector<32x48xf32>, vector<32x48xf32> -> vector<32x48xf32>
    %15 = arith.addf %11, %14 : vector<32x48xf32>
    %c30_i32 = arith.constant 30 : i32
    %16 = tpu.dynamic_rotate %7 by %c30_i32 dim 0 : vector<32x32xf32>, i32 -> vector<32x32xf32>
    %c128 = arith.constant 128 : index
    %c0_8 = arith.constant 0 : index
    %17 = vector.load %arg1[%c128, %c0_8] : memref<312x48xf32, #tpu.memory_space<vmem>>, vector<32x48xf32>
    %cst_9 = arith.constant dense<0.000000e+00> : vector<32x48xf32>
    %18 = tpu.matmul %16, %17, %cst_9 {dimension_numbers = #tpu.dot_dimension_numbers<[1], [0], [0], [1], [0, 0, 1, 1], [], []>} : vector<32x32xf32>, vector<32x48xf32>, vector<32x48xf32> -> vector<32x48xf32>
    %19 = arith.addf %15, %18 : vector<32x48xf32>
    %c29_i32 = arith.constant 29 : i32
    %20 = tpu.dynamic_rotate %7 by %c29_i32 dim 0 : vector<32x32xf32>, i32 -> vector<32x32xf32>
    %c160 = arith.constant 160 : index
    %c0_10 = arith.constant 0 : index
    %21 = vector.load %arg1[%c160, %c0_10] : memref<312x48xf32, #tpu.memory_space<vmem>>, vector<32x48xf32>
    %cst_11 = arith.constant dense<0.000000e+00> : vector<32x48xf32>
    %22 = tpu.matmul %20, %21, %cst_11 {dimension_numbers = #tpu.dot_dimension_numbers<[1], [0], [0], [1], [0, 0, 1, 1], [], []>} : vector<32x32xf32>, vector<32x48xf32>, vector<32x48xf32> -> vector<32x48xf32>
    %23 = arith.addf %19, %22 : vector<32x48xf32>
    %c28_i32 = arith.constant 28 : i32
    %24 = tpu.dynamic_rotate %7 by %c28_i32 dim 0 : vector<32x32xf32>, i32 -> vector<32x32xf32>
    %c192 = arith.constant 192 : index
    %c0_12 = arith.constant 0 : index
    %25 = vector.load %arg1[%c192, %c0_12] : memref<312x48xf32, #tpu.memory_space<vmem>>, vector<32x48xf32>
    %cst_13 = arith.constant dense<0.000000e+00> : vector<32x48xf32>
    %26 = tpu.matmul %24, %25, %cst_13 {dimension_numbers = #tpu.dot_dimension_numbers<[1], [0], [0], [1], [0, 0, 1, 1], [], []>} : vector<32x32xf32>, vector<32x48xf32>, vector<32x48xf32> -> vector<32x48xf32>
    %27 = arith.addf %23, %26 : vector<32x48xf32>
    %c224 = arith.constant 224 : index
    %c0_14 = arith.constant 0 : index
    %28 = vector.load %arg1[%c224, %c0_14] : memref<312x48xf32, #tpu.memory_space<vmem>>, vector<1x48xf32>
    %29 = vector.broadcast %28 : vector<1x48xf32> to vector<32x48xf32>
    %30 = arith.addf %27, %29 : vector<32x48xf32>
    %cst_15 = arith.constant 0.000000e+00 : f32
    %31 = vector.broadcast %cst_15 : f32 to vector<32x48xf32>
    %32 = arith.cmpf ogt, %30, %31 : vector<32x48xf32>
    %cst_16 = arith.constant 0.00999999977 : f32
    %33 = vector.broadcast %cst_16 : f32 to vector<32x48xf32>
    %34 = arith.mulf %33, %30 : vector<32x48xf32>
    %35 = arith.select %32, %30, %34 : vector<32x48xi1>, vector<32x48xf32>
    %36 = vector.shape_cast %35 : vector<32x48xf32> to vector<2x16x48xf32>
    %37 = tpu.iota {dimensions = array<i32: 1>} : vector<2x16x48xi32>
    %38 = tpu.iota {dimensions = array<i32: 2>} : vector<2x16x48xi32>
    %c16_i32 = arith.constant 16 : i32
    %39 = vector.broadcast %c16_i32 : i32 to vector<2x16x48xi32>
    %40 = arith.cmpi slt, %38, %39 : vector<2x16x48xi32>
    %c32_i32 = arith.constant 32 : i32
    %41 = vector.broadcast %c32_i32 : i32 to vector<2x16x48xi32>
    %42 = arith.cmpi slt, %38, %41 : vector<2x16x48xi32>
    %c12_i32 = arith.constant 12 : i32
    %c11_i32 = arith.constant 11 : i32
    %43 = vector.broadcast %c12_i32 : i32 to vector<2x16x48xi32>
    %44 = vector.broadcast %c11_i32 : i32 to vector<2x16x48xi32>
    %45 = arith.select %42, %43, %44 : vector<2x16x48xi1>, vector<2x16x48xi32>
    %c13_i32 = arith.constant 13 : i32
    %46 = vector.broadcast %c13_i32 : i32 to vector<2x16x48xi32>
    %47 = arith.select %40, %46, %45 : vector<2x16x48xi1>, vector<2x16x48xi32>
    %48 = arith.cmpi sle, %37, %47 : vector<2x16x48xi32>
    %cst_17 = arith.constant 0xFF800000 : f32
    %49 = vector.broadcast %cst_17 : f32 to vector<2x16x48xf32>
    %50 = arith.select %48, %36, %49 : vector<2x16x48xi1>, vector<2x16x48xf32>
    %cst_18 = arith.constant dense<0xFF800000> : vector<2x48xf32>
    %51 = vector.multi_reduction <maximumf>, %50, %cst_18 [1] : vector<2x16x48xf32> to vector<2x48xf32>
    %c232 = arith.constant 232 : index
    %c0_19 = arith.constant 0 : index
    %52 = vector.load %arg1[%c232, %c0_19] : memref<312x48xf32, #tpu.memory_space<vmem>>, vector<48x32xf32>
    %cst_20 = arith.constant dense<0.000000e+00> : vector<2x32xf32>
    %53 = tpu.matmul %51, %52, %cst_20 {dimension_numbers = #tpu.dot_dimension_numbers<[1], [0], [0], [1], [0, 0, 1, 1], [], []>} : vector<2x48xf32>, vector<48x32xf32>, vector<2x32xf32> -> vector<2x32xf32>
    %c225 = arith.constant 225 : index
    %c0_21 = arith.constant 0 : index
    %54 = vector.load %arg1[%c225, %c0_21] : memref<312x48xf32, #tpu.memory_space<vmem>>, vector<1x32xf32>
    %55 = vector.broadcast %54 : vector<1x32xf32> to vector<2x32xf32>
    %56 = arith.addf %53, %55 : vector<2x32xf32>
    %57 = math.tanh %56 : vector<2x32xf32>
    %c280 = arith.constant 280 : index
    %c0_22 = arith.constant 0 : index
    %58 = vector.load %arg1[%c280, %c0_22] : memref<312x48xf32, #tpu.memory_space<vmem>>, vector<32x4xf32>
    %cst_23 = arith.constant dense<0.000000e+00> : vector<2x4xf32>
    %59 = tpu.matmul %57, %58, %cst_23 {dimension_numbers = #tpu.dot_dimension_numbers<[1], [0], [0], [1], [0, 0, 1, 1], [], []>} : vector<2x32xf32>, vector<32x4xf32>, vector<2x4xf32> -> vector<2x4xf32>
    %c226 = arith.constant 226 : index
    %c0_24 = arith.constant 0 : index
    %60 = vector.load %arg1[%c226, %c0_24] : memref<312x48xf32, #tpu.memory_space<vmem>>, vector<1x4xf32>
    %61 = vector.broadcast %60 : vector<1x4xf32> to vector<2x4xf32>
    %62 = arith.addf %59, %61 : vector<2x4xf32>
    %cst_25 = arith.constant 0.000000e+00 : f32
    %63 = vector.broadcast %cst_25 : f32 to vector<2x4xf32>
    %64 = arith.maximumf %62, %63 : vector<2x4xf32>
    %c0_26 = arith.constant 0 : index
    %c0_27 = arith.constant 0 : index
    %65 = vector.load %arg2[%c0_26, %c0_27] : memref<2x4xf32, #tpu.memory_space<vmem>>, vector<2x4xf32>
    tpu.vector_store %arg2[%c0_26, %c0_27], %64 {strides = array<i32>} : memref<2x4xf32, #tpu.memory_space<vmem>>, vector<2x4xf32>,
    return
  }
}

</mosaic_0001>

<llo_original>
// kernel: tpu_custom_call.1
$region0: #{tpu_custom_call.1}
  #allocation0 [shape = 'u32[]', space=smem, size = 0x4, offset = 0x4, fixed_abs, tag = 'smem constant byte address 0x4 - core index']
  #allocation1 [shape = 'u32[144,128]{1,0:T(1,128)}', space=vmem, size = 0x12000, scoped, tag = 'internal scratch']
  %s0 = inlined_call_operand.vmem [shape: s32[32,1], index: 0, kind: input, shape index: {}]
  %s1 = inlined_call_operand.vmem [shape: f32[312,48], index: 1, kind: input, shape index: {}]
  %s2 = inlined_call_operand.hbm [shape: f32[2,4], index: 2, kind: output, shape index: {}]
  %s3 = sld [smem:[#allocation0]]
  $region18: #{tpu_custom_call.1} parent=0
    _
  %s5 = ssub.s32 1, %s3
  %s6 = scalar_select 0, %s5, %s3
  $region1: #{tpu_custom_call.1} parent=0
    #allocation2 [shape = 'u8[1024]{0}', space=vmem, size = 0x400, scoped, tag = 'output window, operand 0, single buffered']
    #allocation3 [shape = 's32[1]{0}', space=sflag, size = 0x4, scoped, tag = 'scoped memory for tpu_custom_call.1']
    %7 = vsyncpa [#allocation3], 0
    // Predicated region
    $region2: #{tpu_custom_call.1} parent=1 // pred_check
      _
    $region3: #{tpu_custom_call.1} parent=1 // pred_check_branch
      %9 = sbr.rel (0) target = $region5
    $region4: #{tpu_custom_call.1} parent=1 // pred_region
      _
    $region5: #{tpu_custom_call.1} parent=1 // pred_fallthru
      _
    // Predicated region
    $region6: #{tpu_custom_call.1} parent=1 // pred_check
      _
    $region7: #{tpu_custom_call.1} parent=1 // pred_check_branch
      %11 = sbr.rel (0) target = $region9
    $region8: #{tpu_custom_call.1} parent=1 // pred_region
      _
    $region9: #{tpu_custom_call.1} parent=1 // pred_fallthru
      _
    %v12 = vld [vmem:[%s0] sm:$0xff]
    %v13 = vld [vmem:[%s0 + $0x8] sm:$0xff]
    %v14 = vld [vmem:[%s0 + $0x10] sm:$0xff]
    %v15 = vld [vmem:[%s0 + $0x18] sm:$0xff]
    %v16 = vlaneseq
    %v17 = vand.u32 %v16, 127
    %18 = vset.pattern.permute.xlu0 0
    %19 = vperm.xlu0 %18, %v12
    %v20 = vpop.permute.xlu0 %19
    %21 = vset.pattern.permute.xlu0 0
    %22 = vperm.xlu0 %21, %v13
    %v23 = vpop.permute.xlu0 %22
    %24 = vset.pattern.permute.xlu0 0
    %25 = vperm.xlu0 %24, %v14
    %v26 = vpop.permute.xlu0 %25
    %27 = vset.pattern.permute.xlu0 0
    %28 = vperm.xlu0 %27, %v15
    %v29 = vpop.permute.xlu0 %28
    %vm30 = vcmp.eq.s32.totalorder %v20, %v17
    %vm31 = vcmp.eq.s32.totalorder %v23, %v17
    %vm32 = vcmp.eq.s32.totalorder %v26, %v17
    %vm33 = vcmp.eq.s32.totalorder %v29, %v17
    %v34 = vsel %vm30, 1, 0
    %v35 = vsel %vm31, 1, 0
    %v36 = vsel %vm32, 1, 0
    %v37 = vsel %vm33, 1, 0
    %v38 = vcvt.s32.f32 %v34
    %v39 = vcvt.s32.f32 %v35
    %v40 = vcvt.s32.f32 %v36
    %v41 = vcvt.s32.f32 %v37
    %v42 = vld [vmem:[%s1] sm:$0xff]
    %v43 = vld [vmem:[%s1 + $0x8] sm:$0xff]
    %v44 = vld [vmem:[%s1 + $0x10] sm:$0xff]
    %v45 = vld [vmem:[%s1 + $0x18] sm:$0xff]
    %v46 = vld [vmem:[%s1 + $0x20] sm:$0xff]
    %v47 = vld [vmem:[%s1 + $0x28] sm:$0xff]
    %v48 = vld [vmem:[%s1 + $0x30] sm:$0xff]
    %v49 = vld [vmem:[%s1 + $0x38] sm:$0xff]
    %vm50 = vcmask 523264
    %v52 = vsel %vm50, %v38, 0
    %v55 = vsel %vm50, %v39, 0
    %v58 = vsel %vm50, %v40, 0
    %v61 = vsel %vm50, %v41, 0
    %63 = vmatprep.subr.mxu0 0.0
    %64 = vmatpush1.msra.mxu0 0.0
    %65 = vmatprep.subr.mxu0 0.0
    %66 = vmatpush1.msra.mxu0 0.0
    %67 = vmatprep.subr.mxu0 0.0
    %68 = vmatpush1.msra.mxu0 0.0
    %69 = vmatprep.subr.mxu0 0.0
    %70 = vmatpush1.msra.mxu0 0.0
    %71 = vmatprep.subr.mxu0 0.0
    %72 = vmatpush1.msra.mxu0 0.0
    %73 = vmatprep.subr.mxu0 0.0
    %74 = vmatpush1.msra.mxu0 0.0
    %75 = vmatprep.subr.mxu0 0.0
    %76 = vmatpush1.msra.mxu0 0.0
    %77 = vmatprep.subr.mxu0 0.0
    %78 = vmatpush1.msra.mxu0 0.0
    %79 = vmatprep.subr.mxu0 0.0
    %80 = vmatpush1.msra.mxu0 %v49
    %81 = vmatprep.subr.mxu0 0.0
    %82 = vmatpush1.msra.mxu0 %v48
    %83 = vmatprep.subr.mxu0 0.0
    %84 = vmatpush1.msra.mxu0 %v47
    %85 = vmatprep.subr.mxu0 0.0
    %86 = vmatpush1.msra.mxu0 %v46
    %87 = vmatprep.subr.mxu0 0.0
    %88 = vmatpush1.msra.mxu0 %v45
    %89 = vmatprep.subr.mxu0 0.0
    %90 = vmatpush1.msra.mxu0 %v44
    %91 = vmatprep.subr.mxu0 0.0
    %92 = vmatpush1.msra.mxu0 %v43
    %93 = vmatprep.subr.mxu0 0.0
    %94 = vmatpush1.msra.mxu0 %v42
    %95 = vmatprep.subr.mxu0 0.0
    %96 = vmatpush2.msra.mxu0 0.0
    %97 = vmatprep.subr.mxu0 0.0
    %98 = vmatpush2.msra.mxu0 0.0
    %99 = vmatprep.subr.mxu0 0.0
    %100 = vmatpush2.msra.mxu0 0.0
    %101 = vmatprep.subr.mxu0 0.0
    %102 = vmatpush2.msra.mxu0 0.0
    %103 = vmatprep.subr.mxu0 0.0
    %104 = vmatpush2.msra.mxu0 0.0
    %105 = vmatprep.subr.mxu0 0.0
    %106 = vmatpush2.msra.mxu0 0.0
    %107 = vmatprep.subr.mxu0 0.0
    %108 = vmatpush2.msra.mxu0 0.0
    %109 = vmatprep.subr.mxu0 0.0
    %110 = vmatpush2.msra.mxu0 0.0
    %111 = vmatprep.subr.mxu0 0.0
    %112 = vmatpush2.msra.mxu0 0.0
    %113 = vmatprep.subr.mxu0 0.0
    %114 = vmatpush2.msra.mxu0 0.0
    %115 = vmatprep.subr.mxu0 0.0
    %116 = vmatpush2.msra.mxu0 0.0
    %117 = vmatprep.subr.mxu0 0.0
    %118 = vmatpush2.msra.mxu0 0.0
    %119 = vmatprep.subr.mxu0 0.0
    %120 = vmatpush2.msra.mxu0 0.0
    %121 = vmatprep.subr.mxu0 0.0
    %122 = vmatpush2.msra.mxu0 0.0
    %123 = vmatprep.subr.mxu0 0.0
    %124 = vmatpush2.msra.mxu0 0.0
    %125 = vmatprep.subr.mxu0 0.0
    %126 = vmatpush2.msra.mxu0 0.0
    %127 = vmatprep.mubr.f32.mxu0 0.0
    %128 = vmatmul.mubr.f32.gmra.mxu0 %v52
    %v129 = vpop.f32.mrf.mxu0
    %v130 = vadd.f32 0.0, %v129
    %v131 = vpop.f32.mrf.mxu0
    %132 = vmatprep.mubr.f32.mxu0 0.0
    %133 = vmatmul.mubr.f32.gmra.mxu0 %v55
    %v134 = vpop.f32.mrf.mxu0
    %v135 = vadd.f32 0.0, %v134
    %v136 = vpop.f32.mrf.mxu0
    %137 = vmatprep.mubr.f32.mxu0 0.0
    %138 = vmatmul.mubr.f32.gmra.mxu0 %v58
    %v139 = vpop.f32.mrf.mxu0
    %v140 = vadd.f32 0.0, %v139
    %v141 = vpop.f32.mrf.mxu0
    %142 = vmatprep.mubr.f32.mxu0 0.0
    %143 = vmatmul.mubr.f32.gmra.mxu0 %v61
    %v144 = vpop.f32.mrf.mxu0
    %v145 = vadd.f32 0.0, %v144
    %v146 = vpop.f32.mrf.mxu0
    %147 = vdwg.mxu0
    %v148 = vld [vmem:[%s1 + $0x40] sm:$0xff]
    %v149 = vld [vmem:[%s1 + $0x48] sm:$0xff]
    %v150 = vld [vmem:[%s1 + $0x50] sm:$0xff]
    %v151 = vld [vmem:[%s1 + $0x58] sm:$0xff]
    %v152 = vrot.slane %v130, 1
    %v153 = vrot.slane %v135, 1
    %v154 = vrot.slane %v140, 1
    %v155 = vrot.slane %v145, 1
    %v156 = vlaneseq
    %v157 = vshrl.u32 %v156, 7
    %vm158 = vcmp.lt.s32.totalorder %v157, 7
    %v159 = vsel %vm158, %v154, %v155
    %v160 = vsel %vm158, %v153, %v154
    %v161 = vsel %vm158, %v152, %v153
    %v162 = vsel %vm158, %v155, %v152
    %v163 = vld [vmem:[%s1 + $0x60] sm:$0xff]
    %v164 = vld [vmem:[%s1 + $0x68] sm:$0xff]
    %v165 = vld [vmem:[%s1 + $0x70] sm:$0xff]
    %v166 = vld [vmem:[%s1 + $0x78] sm:$0xff]
    %vm167 = vcmask 261120
    %v169 = vsel %vm167, %v161, 0
    %v172 = vsel %vm167, %v160, 0
    %v175 = vsel %vm167, %v159, 0
    %v178 = vsel %vm167, %v162, 0
    %180 = vmatprep.subr.mxu0 0.0
    %181 = vmatpush1.msra.mxu0 0.0
    %182 = vmatprep.subr.mxu0 0.0
    %183 = vmatpush1.msra.mxu0 0.0
    %184 = vmatprep.subr.mxu0 0.0
    %185 = vmatpush1.msra.mxu0 0.0
    %186 = vmatprep.subr.mxu0 0.0
    %187 = vmatpush1.msra.mxu0 0.0
    %188 = vmatprep.subr.mxu0 0.0
    %189 = vmatpush1.msra.mxu0 0.0
    %190 = vmatprep.subr.mxu0 0.0
    %191 = vmatpush1.msra.mxu0 0.0
    %192 = vmatprep.subr.mxu0 0.0
    %193 = vmatpush1.msra.mxu0 0.0
    %194 = vmatprep.subr.mxu0 0.0
    %195 = vmatpush1.msra.mxu0 0.0
    %196 = vmatprep.subr.mxu0 0.0
    %197 = vmatpush1.msra.mxu0 0.0
    %198 = vmatprep.subr.mxu0 0.0
    %199 = vmatpush1.msra.mxu0 0.0
    %200 = vmatprep.subr.mxu0 0.0
    %201 = vmatpush1.msra.mxu0 0.0
    %202 = vmatprep.subr.mxu0 0.0
    %203 = vmatpush1.msra.mxu0 0.0
    %204 = vmatprep.subr.mxu0 0.0
    %205 = vmatpush1.msra.mxu0 %v166
    %206 = vmatprep.subr.mxu0 0.0
    %207 = vmatpush1.msra.mxu0 %v165
    %208 = vmatprep.subr.mxu0 0.0
    %209 = vmatpush1.msra.mxu0 %v164
    %210 = vmatprep.subr.mxu0 0.0
    %211 = vmatpush1.msra.mxu0 %v163
    %212 = vmatprep.subr.mxu0 0.0
    %213 = vmatpush2.msra.mxu0 0.0
    %214 = vmatprep.subr.mxu0 0.0
    %215 = vmatpush2.msra.mxu0 0.0
    %216 = vmatprep.subr.mxu0 0.0
    %217 = vmatpush2.msra.mxu0 0.0
    %218 = vmatprep.subr.mxu0 0.0
    %219 = vmatpush2.msra.mxu0 0.0
    %220 = vmatprep.subr.mxu0 0.0
    %221 = vmatpush2.msra.mxu0 0.0
    %222 = vmatprep.subr.mxu0 0.0
    %223 = vmatpush2.msra.mxu0 0.0
    %224 = vmatprep.subr.mxu0 0.0
    %225 = vmatpush2.msra.mxu0 0.0
    %226 = vmatprep.subr.mxu0 0.0
    %227 = vmatpush2.msra.mxu0 0.0
    %228 = vmatprep.subr.mxu0 0.0
    %229 = vmatpush2.msra.mxu0 0.0
    %230 = vmatprep.subr.mxu0 0.0
    %231 = vmatpush2.msra.mxu0 0.0
    %232 = vmatprep.subr.mxu0 0.0
    %233 = vmatpush2.msra.mxu0 0.0
    %234 = vmatprep.subr.mxu0 0.0
    %235 = vmatpush2.msra.mxu0 0.0
    %236 = vmatprep.subr.mxu0 0.0
    %237 = vmatpush2.msra.mxu0 0.0
    %238 = vmatprep.subr.mxu0 0.0
    %239 = vmatpush2.msra.mxu0 0.0
    %240 = vmatprep.subr.mxu0 0.0
    %241 = vmatpush2.msra.mxu0 0.0
    %242 = vmatprep.subr.mxu0 0.0
    %243 = vmatpush2.msra.mxu0 0.0
    %244 = vmatprep.mubr.f32.mxu0 0.0
    %245 = vmatmul.mubr.f32.gmra.mxu0 %v169
    %v246 = vpop.f32.mrf.mxu0
    %v247 = vadd.f32 0.0, %v246
    %v248 = vpop.f32.mrf.mxu0
    %249 = vmatprep.mubr.f32.mxu0 0.0
    %250 = vmatmul.mubr.f32.gmra.mxu0 %v172
    %v251 = vpop.f32.mrf.mxu0
    %v252 = vadd.f32 0.0, %v251
    %v253 = vpop.f32.mrf.mxu0
    %254 = vmatprep.mubr.f32.mxu0 0.0
    %255 = vmatmul.mubr.f32.gmra.mxu0 %v175
    %v256 = vpop.f32.mrf.mxu0
    %v257 = vadd.f32 0.0, %v256
    %v258 = vpop.f32.mrf.mxu0
    %259 = vmatprep.mubr.f32.mxu0 0.0
    %260 = vmatmul.mubr.f32.gmra.mxu0 %v178
    %v261 = vpop.f32.mrf.mxu0
    %v262 = vadd.f32 0.0, %v261
    %v263 = vpop.f32.mrf.mxu0
    %264 = vdwg.mxu0
    %v266 = vsel %vm167, %v130, 0
    %v269 = vsel %vm167, %v135, 0
    %v272 = vsel %vm167, %v140, 0
    %v275 = vsel %vm167, %v145, 0
    %277 = vmatprep.subr.mxu0 0.0
    %278 = vmatpush1.msra.mxu0 0.0
    %279 = vmatprep.subr.mxu0 0.0
    %280 = vmatpush1.msra.mxu0 0.0
    %281 = vmatprep.subr.mxu0 0.0
    %282 = vmatpush1.msra.mxu0 0.0
    %283 = vmatprep.subr.mxu0 0.0
    %284 = vmatpush1.msra.mxu0 0.0
    %285 = vmatprep.subr.mxu0 0.0
    %286 = vmatpush1.msra.mxu0 0.0
    %287 = vmatprep.subr.mxu0 0.0
    %288 = vmatpush1.msra.mxu0 0.0
    %289 = vmatprep.subr.mxu0 0.0
    %290 = vmatpush1.msra.mxu0 0.0
    %291 = vmatprep.subr.mxu0 0.0
    %292 = vmatpush1.msra.mxu0 0.0
    %293 = vmatprep.subr.mxu0 0.0
    %294 = vmatpush1.msra.mxu0 0.0
    %295 = vmatprep.subr.mxu0 0.0
    %296 = vmatpush1.msra.mxu0 0.0
    %297 = vmatprep.subr.mxu0 0.0
    %298 = vmatpush1.msra.mxu0 0.0
    %299 = vmatprep.subr.mxu0 0.0
    %300 = vmatpush1.msra.mxu0 0.0
    %301 = vmatprep.subr.mxu0 0.0
    %302 = vmatpush1.msra.mxu0 %v151
    %303 = vmatprep.subr.mxu0 0.0
    %304 = vmatpush1.msra.mxu0 %v150
    %305 = vmatprep.subr.mxu0 0.0
    %306 = vmatpush1.msra.mxu0 %v149
    %307 = vmatprep.subr.mxu0 0.0
    %308 = vmatpush1.msra.mxu0 %v148
    %309 = vmatprep.subr.mxu0 0.0
    %310 = vmatpush2.msra.mxu0 0.0
    %311 = vmatprep.subr.mxu0 0.0
    %312 = vmatpush2.msra.mxu0 0.0
    %313 = vmatprep.subr.mxu0 0.0
    %314 = vmatpush2.msra.mxu0 0.0
    %315 = vmatprep.subr.mxu0 0.0
    %316 = vmatpush2.msra.mxu0 0.0
    %317 = vmatprep.subr.mxu0 0.0
    %318 = vmatpush2.msra.mxu0 0.0
    %319 = vmatprep.subr.mxu0 0.0
    %320 = vmatpush2.msra.mxu0 0.0
    %321 = vmatprep.subr.mxu0 0.0
    %322 = vmatpush2.msra.mxu0 0.0
    %323 = vmatprep.subr.mxu0 0.0
    %324 = vmatpush2.msra.mxu0 0.0
    %325 = vmatprep.subr.mxu0 0.0
    %326 = vmatpush2.msra.mxu0 0.0
    %327 = vmatprep.subr.mxu0 0.0
    %328 = vmatpush2.msra.mxu0 0.0
    %329 = vmatprep.subr.mxu0 0.0
    %330 = vmatpush2.msra.mxu0 0.0
    %331 = vmatprep.subr.mxu0 0.0
    %332 = vmatpush2.msra.mxu0 0.0
    %333 = vmatprep.subr.mxu0 0.0
    %334 = vmatpush2.msra.mxu0 0.0
    %335 = vmatprep.subr.mxu0 0.0
    %336 = vmatpush2.msra.mxu0 0.0
    %337 = vmatprep.subr.mxu0 0.0
    %338 = vmatpush2.msra.mxu0 0.0
    %339 = vmatprep.subr.mxu0 0.0
    %340 = vmatpush2.msra.mxu0 0.0
    %341 = vmatprep.mubr.f32.mxu0 0.0
    %342 = vmatmul.mubr.f32.gmra.mxu0 %v266
    %v343 = vpop.f32.mrf.mxu0
    %v344 = vadd.f32 %v247, %v343
    %v345 = vpop.f32.mrf.mxu0
    %346 = vmatprep.mubr.f32.mxu0 0.0
    %347 = vmatmul.mubr.f32.gmra.mxu0 %v269
    %v348 = vpop.f32.mrf.mxu0
    %v349 = vadd.f32 %v252, %v348
    %v350 = vpop.f32.mrf.mxu0
    %351 = vmatprep.mubr.f32.mxu0 0.0
    %352 = vmatmul.mubr.f32.gmra.mxu0 %v272
    %v353 = vpop.f32.mrf.mxu0
    %v354 = vadd.f32 %v257, %v353
    %v355 = vpop.f32.mrf.mxu0
    %356 = vmatprep.mubr.f32.mxu0 0.0
    %357 = vmatmul.mubr.f32.gmra.mxu0 %v275
    %v358 = vpop.f32.mrf.mxu0
    %v359 = vadd.f32 %v262, %v358
    %v360 = vpop.f32.mrf.mxu0
    %361 = vdwg.mxu0
    %v362 = vrot.slane %v130, 2
    %v363 = vrot.slane %v135, 2
    %v364 = vrot.slane %v140, 2
    %v365 = vrot.slane %v145, 2
    %vm366 = vcmp.lt.s32.totalorder %v157, 6
    %v367 = vsel %vm366, %v364, %v365
    %v368 = vsel %vm366, %v363, %v364
    %v369 = vsel %vm366, %v362, %v363
    %v370 = vsel %vm366, %v365, %v362
    %v371 = vld [vmem:[%s1 + $0x80] sm:$0xff]
    %v372 = vld [vmem:[%s1 + $0x88] sm:$0xff]
    %v373 = vld [vmem:[%s1 + $0x90] sm:$0xff]
    %v374 = vld [vmem:[%s1 + $0x98] sm:$0xff]
    %v376 = vsel %vm167, %v369, 0
    %v379 = vsel %vm167, %v368, 0
    %v382 = vsel %vm167, %v367, 0
    %v385 = vsel %vm167, %v370, 0
    %387 = vmatprep.subr.mxu0 0.0
    %388 = vmatpush1.msra.mxu0 0.0
    %389 = vmatprep.subr.mxu0 0.0
    %390 = vmatpush1.msra.mxu0 0.0
    %391 = vmatprep.subr.mxu0 0.0
    %392 = vmatpush1.msra.mxu0 0.0
    %393 = vmatprep.subr.mxu0 0.0
    %394 = vmatpush1.msra.mxu0 0.0
    %395 = vmatprep.subr.mxu0 0.0
    %396 = vmatpush1.msra.mxu0 0.0
    %397 = vmatprep.subr.mxu0 0.0
    %398 = vmatpush1.msra.mxu0 0.0
    %399 = vmatprep.subr.mxu0 0.0
    %400 = vmatpush1.msra.mxu0 0.0
    %401 = vmatprep.subr.mxu0 0.0
    %402 = vmatpush1.msra.mxu0 0.0
    %403 = vmatprep.subr.mxu0 0.0
    %404 = vmatpush1.msra.mxu0 0.0
    %405 = vmatprep.subr.mxu0 0.0
    %406 = vmatpush1.msra.mxu0 0.0
    %407 = vmatprep.subr.mxu0 0.0
    %408 = vmatpush1.msra.mxu0 0.0
    %409 = vmatprep.subr.mxu0 0.0
    %410 = vmatpush1.msra.mxu0 0.0
    %411 = vmatprep.subr.mxu0 0.0
    %412 = vmatpush1.msra.mxu0 %v374
    %413 = vmatprep.subr.mxu0 0.0
    %414 = vmatpush1.msra.mxu0 %v373
    %415 = vmatprep.subr.mxu0 0.0
    %416 = vmatpush1.msra.mxu0 %v372
    %417 = vmatprep.subr.mxu0 0.0
    %418 = vmatpush1.msra.mxu0 %v371
    %419 = vmatprep.subr.mxu0 0.0
    %420 = vmatpush2.msra.mxu0 0.0
    %421 = vmatprep.subr.mxu0 0.0
    %422 = vmatpush2.msra.mxu0 0.0
    %423 = vmatprep.subr.mxu0 0.0
    %424 = vmatpush2.msra.mxu0 0.0
    %425 = vmatprep.subr.mxu0 0.0
    %426 = vmatpush2.msra.mxu0 0.0
    %427 = vmatprep.subr.mxu0 0.0
    %428 = vmatpush2.msra.mxu0 0.0
    %429 = vmatprep.subr.mxu0 0.0
    %430 = vmatpush2.msra.mxu0 0.0
    %431 = vmatprep.subr.mxu0 0.0
    %432 = vmatpush2.msra.mxu0 0.0
    %433 = vmatprep.subr.mxu0 0.0
    %434 = vmatpush2.msra.mxu0 0.0
    %435 = vmatprep.subr.mxu0 0.0
    %436 = vmatpush2.msra.mxu0 0.0
    %437 = vmatprep.subr.mxu0 0.0
    %438 = vmatpush2.msra.mxu0 0.0
    %439 = vmatprep.subr.mxu0 0.0
    %440 = vmatpush2.msra.mxu0 0.0
    %441 = vmatprep.subr.mxu0 0.0
    %442 = vmatpush2.msra.mxu0 0.0
    %443 = vmatprep.subr.mxu0 0.0
    %444 = vmatpush2.msra.mxu0 0.0
    %445 = vmatprep.subr.mxu0 0.0
    %446 = vmatpush2.msra.mxu0 0.0
    %447 = vmatprep.subr.mxu0 0.0
    %448 = vmatpush2.msra.mxu0 0.0
    %449 = vmatprep.subr.mxu0 0.0
    %450 = vmatpush2.msra.mxu0 0.0
    %451 = vmatprep.mubr.f32.mxu0 0.0
    %452 = vmatmul.mubr.f32.gmra.mxu0 %v376
    %v453 = vpop.f32.mrf.mxu0
    %v454 = vadd.f32 0.0, %v453
    %v455 = vpop.f32.mrf.mxu0
    %456 = vmatprep.mubr.f32.mxu0 0.0
    %457 = vmatmul.mubr.f32.gmra.mxu0 %v379
    %v458 = vpop.f32.mrf.mxu0
    %v459 = vadd.f32 0.0, %v458
    %v460 = vpop.f32.mrf.mxu0
    %461 = vmatprep.mubr.f32.mxu0 0.0
    %462 = vmatmul.mubr.f32.gmra.mxu0 %v382
    %v463 = vpop.f32.mrf.mxu0
    %v464 = vadd.f32 0.0, %v463
    %v465 = vpop.f32.mrf.mxu0
    %466 = vmatprep.mubr.f32.mxu0 0.0
    %467 = vmatmul.mubr.f32.gmra.mxu0 %v385
    %v468 = vpop.f32.mrf.mxu0
    %v469 = vadd.f32 0.0, %v468
    %v470 = vpop.f32.mrf.mxu0
    %471 = vdwg.mxu0
    %v472 = vadd.f32 %v344, %v454
    %v473 = vadd.f32 %v349, %v459
    %v474 = vadd.f32 %v354, %v464
    %v475 = vadd.f32 %v359, %v469
    %v476 = vrot.slane %v130, 3
    %v477 = vrot.slane %v135, 3
    %v478 = vrot.slane %v140, 3
    %v479 = vrot.slane %v145, 3
    %vm480 = vcmp.lt.s32.totalorder %v157, 5
    %v481 = vsel %vm480, %v478, %v479
    %v482 = vsel %vm480, %v477, %v478
    %v483 = vsel %vm480, %v476, %v477
    %v484 = vsel %vm480, %v479, %v476
    %v485 = vld [vmem:[%s1 + $0xa0] sm:$0xff]
    %v486 = vld [vmem:[%s1 + $0xa8] sm:$0xff]
    %v487 = vld [vmem:[%s1 + $0xb0] sm:$0xff]
    %v488 = vld [vmem:[%s1 + $0xb8] sm:$0xff]
    %v490 = vsel %vm167, %v483, 0
    %v493 = vsel %vm167, %v482, 0
    %v496 = vsel %vm167, %v481, 0
    %v499 = vsel %vm167, %v484, 0
    %501 = vmatprep.subr.mxu0 0.0
    %502 = vmatpush1.msra.mxu0 0.0
    %503 = vmatprep.subr.mxu0 0.0
    %504 = vmatpush1.msra.mxu0 0.0
    %505 = vmatprep.subr.mxu0 0.0
    %506 = vmatpush1.msra.mxu0 0.0
    %507 = vmatprep.subr.mxu0 0.0
    %508 = vmatpush1.msra.mxu0 0.0
    %509 = vmatprep.subr.mxu0 0.0
    %510 = vmatpush1.msra.mxu0 0.0
    %511 = vmatprep.subr.mxu0 0.0
    %512 = vmatpush1.msra.mxu0 0.0
    %513 = vmatprep.subr.mxu0 0.0
    %514 = vmatpush1.msra.mxu0 0.0
    %515 = vmatprep.subr.mxu0 0.0
    %516 = vmatpush1.msra.mxu0 0.0
    %517 = vmatprep.subr.mxu0 0.0
    %518 = vmatpush1.msra.mxu0 0.0
    %519 = vmatprep.subr.mxu0 0.0
    %520 = vmatpush1.msra.mxu0 0.0
    %521 = vmatprep.subr.mxu0 0.0
    %522 = vmatpush1.msra.mxu0 0.0
    %523 = vmatprep.subr.mxu0 0.0
    %524 = vmatpush1.msra.mxu0 0.0
    %525 = vmatprep.subr.mxu0 0.0
    %526 = vmatpush1.msra.mxu0 %v488
    %527 = vmatprep.subr.mxu0 0.0
    %528 = vmatpush1.msra.mxu0 %v487
    %529 = vmatprep.subr.mxu0 0.0
    %530 = vmatpush1.msra.mxu0 %v486
    %531 = vmatprep.subr.mxu0 0.0
    %532 = vmatpush1.msra.mxu0 %v485
    %533 = vmatprep.subr.mxu0 0.0
    %534 = vmatpush2.msra.mxu0 0.0
    %535 = vmatprep.subr.mxu0 0.0
    %536 = vmatpush2.msra.mxu0 0.0
    %537 = vmatprep.subr.mxu0 0.0
    %538 = vmatpush2.msra.mxu0 0.0
    %539 = vmatprep.subr.mxu0 0.0
    %540 = vmatpush2.msra.mxu0 0.0
    %541 = vmatprep.subr.mxu0 0.0
    %542 = vmatpush2.msra.mxu0 0.0
    %543 = vmatprep.subr.mxu0 0.0
    %544 = vmatpush2.msra.mxu0 0.0
    %545 = vmatprep.subr.mxu0 0.0
    %546 = vmatpush2.msra.mxu0 0.0
    %547 = vmatprep.subr.mxu0 0.0
    %548 = vmatpush2.msra.mxu0 0.0
    %549 = vmatprep.subr.mxu0 0.0
    %550 = vmatpush2.msra.mxu0 0.0
    %551 = vmatprep.subr.mxu0 0.0
    %552 = vmatpush2.msra.mxu0 0.0
    %553 = vmatprep.subr.mxu0 0.0
    %554 = vmatpush2.msra.mxu0 0.0
    %555 = vmatprep.subr.mxu0 0.0
    %556 = vmatpush2.msra.mxu0 0.0
    %557 = vmatprep.subr.mxu0 0.0
    %558 = vmatpush2.msra.mxu0 0.0
    %559 = vmatprep.subr.mxu0 0.0
    %560 = vmatpush2.msra.mxu0 0.0
    %561 = vmatprep.subr.mxu0 0.0
    %562 = vmatpush2.msra.mxu0 0.0
    %563 = vmatprep.subr.mxu0 0.0
    %564 = vmatpush2.msra.mxu0 0.0
    %565 = vmatprep.mubr.f32.mxu0 0.0
    %566 = vmatmul.mubr.f32.gmra.mxu0 %v490
    %v567 = vpop.f32.mrf.mxu0
    %v568 = vadd.f32 0.0, %v567
    %v569 = vpop.f32.mrf.mxu0
    %570 = vmatprep.mubr.f32.mxu0 0.0
    %571 = vmatmul.mubr.f32.gmra.mxu0 %v493
    %v572 = vpop.f32.mrf.mxu0
    %v573 = vadd.f32 0.0, %v572
    %v574 = vpop.f32.mrf.mxu0
    %575 = vmatprep.mubr.f32.mxu0 0.0
    %576 = vmatmul.mubr.f32.gmra.mxu0 %v496
    %v577 = vpop.f32.mrf.mxu0
    %v578 = vadd.f32 0.0, %v577
    %v579 = vpop.f32.mrf.mxu0
    %580 = vmatprep.mubr.f32.mxu0 0.0
    %581 = vmatmul.mubr.f32.gmra.mxu0 %v499
    %v582 = vpop.f32.mrf.mxu0
    %v583 = vadd.f32 0.0, %v582
    %v584 = vpop.f32.mrf.mxu0
    %585 = vdwg.mxu0
    %v586 = vadd.f32 %v472, %v568
    %v587 = vadd.f32 %v473, %v573
    %v588 = vadd.f32 %v474, %v578
    %v589 = vadd.f32 %v475, %v583
    %v590 = vrot.slane %v130, 4
    %v591 = vrot.slane %v135, 4
    %v592 = vrot.slane %v140, 4
    %v593 = vrot.slane %v145, 4
    %vm594 = vcmp.lt.s32.totalorder %v157, 4
    %v595 = vsel %vm594, %v592, %v593
    %v596 = vsel %vm594, %v591, %v592
    %v597 = vsel %vm594, %v590, %v591
    %v598 = vsel %vm594, %v593, %v590
    %v599 = vld [vmem:[%s1 + $0xc0] sm:$0xff]
    %v600 = vld [vmem:[%s1 + $0xc8] sm:$0xff]
    %v601 = vld [vmem:[%s1 + $0xd0] sm:$0xff]
    %v602 = vld [vmem:[%s1 + $0xd8] sm:$0xff]
    %v604 = vsel %vm167, %v597, 0
    %v607 = vsel %vm167, %v596, 0
    %v610 = vsel %vm167, %v595, 0
    %v613 = vsel %vm167, %v598, 0
    %615 = vmatprep.subr.mxu0 0.0
    %616 = vmatpush1.msra.mxu0 0.0
    %617 = vmatprep.subr.mxu0 0.0
    %618 = vmatpush1.msra.mxu0 0.0
    %619 = vmatprep.subr.mxu0 0.0
    %620 = vmatpush1.msra.mxu0 0.0
    %621 = vmatprep.subr.mxu0 0.0
    %622 = vmatpush1.msra.mxu0 0.0
    %623 = vmatprep.subr.mxu0 0.0
    %624 = vmatpush1.msra.mxu0 0.0
    %625 = vmatprep.subr.mxu0 0.0
    %626 = vmatpush1.msra.mxu0 0.0
    %627 = vmatprep.subr.mxu0 0.0
    %628 = vmatpush1.msra.mxu0 0.0
    %629 = vmatprep.subr.mxu0 0.0
    %630 = vmatpush1.msra.mxu0 0.0
    %631 = vmatprep.subr.mxu0 0.0
    %632 = vmatpush1.msra.mxu0 0.0
    %633 = vmatprep.subr.mxu0 0.0
    %634 = vmatpush1.msra.mxu0 0.0
    %635 = vmatprep.subr.mxu0 0.0
    %636 = vmatpush1.msra.mxu0 0.0
    %637 = vmatprep.subr.mxu0 0.0
    %638 = vmatpush1.msra.mxu0 0.0
    %639 = vmatprep.subr.mxu0 0.0
    %640 = vmatpush1.msra.mxu0 %v602
    %641 = vmatprep.subr.mxu0 0.0
    %642 = vmatpush1.msra.mxu0 %v601
    %643 = vmatprep.subr.mxu0 0.0
    %644 = vmatpush1.msra.mxu0 %v600
    %645 = vmatprep.subr.mxu0 0.0
    %646 = vmatpush1.msra.mxu0 %v599
    %647 = vmatprep.subr.mxu0 0.0
    %648 = vmatpush2.msra.mxu0 0.0
    %649 = vmatprep.subr.mxu0 0.0
    %650 = vmatpush2.msra.mxu0 0.0
    %651 = vmatprep.subr.mxu0 0.0
    %652 = vmatpush2.msra.mxu0 0.0
    %653 = vmatprep.subr.mxu0 0.0
    %654 = vmatpush2.msra.mxu0 0.0
    %655 = vmatprep.subr.mxu0 0.0
    %656 = vmatpush2.msra.mxu0 0.0
    %657 = vmatprep.subr.mxu0 0.0
    %658 = vmatpush2.msra.mxu0 0.0
    %659 = vmatprep.subr.mxu0 0.0
    %660 = vmatpush2.msra.mxu0 0.0
    %661 = vmatprep.subr.mxu0 0.0
    %662 = vmatpush2.msra.mxu0 0.0
    %663 = vmatprep.subr.mxu0 0.0
    %664 = vmatpush2.msra.mxu0 0.0
    %665 = vmatprep.subr.mxu0 0.0
    %666 = vmatpush2.msra.mxu0 0.0
    %667 = vmatprep.subr.mxu0 0.0
    %668 = vmatpush2.msra.mxu0 0.0
    %669 = vmatprep.subr.mxu0 0.0
    %670 = vmatpush2.msra.mxu0 0.0
    %671 = vmatprep.subr.mxu0 0.0
    %672 = vmatpush2.msra.mxu0 0.0
    %673 = vmatprep.subr.mxu0 0.0
    %674 = vmatpush2.msra.mxu0 0.0
    %675 = vmatprep.subr.mxu0 0.0
    %676 = vmatpush2.msra.mxu0 0.0
    %677 = vmatprep.subr.mxu0 0.0
    %678 = vmatpush2.msra.mxu0 0.0
    %679 = vmatprep.mubr.f32.mxu0 0.0
    %680 = vmatmul.mubr.f32.gmra.mxu0 %v604
    %v681 = vpop.f32.mrf.mxu0
    %v682 = vadd.f32 0.0, %v681
    %v683 = vpop.f32.mrf.mxu0
    %684 = vmatprep.mubr.f32.mxu0 0.0
    %685 = vmatmul.mubr.f32.gmra.mxu0 %v607
    %v686 = vpop.f32.mrf.mxu0
    %v687 = vadd.f32 0.0, %v686
    %v688 = vpop.f32.mrf.mxu0
    %689 = vmatprep.mubr.f32.mxu0 0.0
    %690 = vmatmul.mubr.f32.gmra.mxu0 %v610
    %v691 = vpop.f32.mrf.mxu0
    %v692 = vadd.f32 0.0, %v691
    %v693 = vpop.f32.mrf.mxu0
    %694 = vmatprep.mubr.f32.mxu0 0.0
    %695 = vmatmul.mubr.f32.gmra.mxu0 %v613
    %v696 = vpop.f32.mrf.mxu0
    %v697 = vadd.f32 0.0, %v696
    %v698 = vpop.f32.mrf.mxu0
    %699 = vdwg.mxu0
    %v700 = vadd.f32 %v586, %v682
    %v701 = vadd.f32 %v587, %v687
    %v702 = vadd.f32 %v588, %v692
    %v703 = vadd.f32 %v589, %v697
    %v704 = vld [vmem:[%s1 + $0xe0] sm:$0x1]
    %v705 = vlaneseq
    %v706 = vshrl.u32 %v705, 7
    %v707 = vsub.s32 0, %v706
    %v708 = vrot.slane %v704, %v707
    %v709 = vadd.f32 %v700, %v708
    %v710 = vadd.f32 %v701, %v708
    %v711 = vadd.f32 %v702, %v708
    %v712 = vadd.f32 %v703, %v708
    %vm713 = vcmp.gt.f32.partialorder %v709, 0.0
    %vm714 = vcmp.gt.f32.partialorder %v710, 0.0
    %vm715 = vcmp.gt.f32.partialorder %v711, 0.0
    %vm716 = vcmp.gt.f32.partialorder %v712, 0.0
    %v717 = vmul.f32 %v709, 0.01
    %v718 = vmul.f32 %v710, 0.01
    %v719 = vmul.f32 %v711, 0.01
    %v720 = vmul.f32 %v712, 0.01
    %v721 = vsel %vm713, %v709, %v717
    %v722 = vsel %vm714, %v710, %v718
    %v723 = vsel %vm715, %v711, %v719
    %v724 = vsel %vm716, %v712, %v720
    %v725 = vadd.s32 %v157, 8
    %vm726 = vcmp.lt.s32.totalorder %v17, 16
    %vm727 = vcmp.lt.s32.totalorder %v17, 32
    %v728 = vsel %vm727, 12, 11
    %v729 = vsel %vm726, 13, %v728
    %vm730 = vcmp.le.s32.totalorder %v157, %v729
    %vm731 = vcmp.le.s32.totalorder %v725, %v729
    %v732 = vsel %vm730, %v721, -inf
    %v733 = vsel %vm731, %v722, -inf
    %v734 = vsel %vm730, %v723, -inf
    %v735 = vsel %vm731, %v724, -inf
    %vm736 = vcmask 392192
    %v737 = vsel %vm736, %v732, -inf
    %v738 = vsel %vm736, %v733, -inf
    %v739 = vmax.f32 %v737, %v738
    %v740 = vrot.slane %v739, 4
    %v741 = vmax.f32 %v739, %v740
    %v742 = vrot.slane %v741, 2
    %v743 = vmax.f32 %v741, %v742
    %v744 = vrot.slane %v743, 1
    %v745 = vmax.f32 %v743, %v744
    %v746 = vsel %vm736, %v734, -inf
    %v747 = vsel %vm736, %v735, -inf
    %v748 = vmax.f32 %v746, %v747
    %v749 = vrot.slane %v748, 4
    %v750 = vmax.f32 %v748, %v749
    %v751 = vrot.slane %v750, 2
    %v752 = vmax.f32 %v750, %v751
    %v753 = vrot.slane %v752, 1
    %v754 = vmax.f32 %v752, %v753
    %v755 = vld [vmem:[%s1 + $0xe8] sm:$0xff]
    %v756 = vld [vmem:[%s1 + $0xf0] sm:$0xff]
    %v757 = vld [vmem:[%s1 + $0xf8] sm:$0xff]
    %v758 = vld [vmem:[%s1 + $0x100] sm:$0xff]
    %v759 = vld [vmem:[%s1 + $0x108] sm:$0xff]
    %v760 = vld [vmem:[%s1 + $0x110] sm:$0xff]
    %v761 = vld [vmem:[%s1 + $0xe1] sm:$0x1]
    %v762 = vlaneseq
    %v763 = vshrl.u32 %v762, 7
    %v764 = vsub.s32 0, %v763
    %v765 = vrot.slane %v761, %v764
    %vm768 = vcmask 1041409
    %v769 = vsel %vm768, %v754, %v745
    %v770 = vsel %vm736, %v769, 0
    %772 = vmatprep.subr.mxu0 0.0
    %773 = vmatpush1.msra.mxu0 0.0
    %774 = vmatprep.subr.mxu0 0.0
    %775 = vmatpush1.msra.mxu0 0.0
    %776 = vmatprep.subr.mxu0 0.0
    %777 = vmatpush1.msra.mxu0 0.0
    %778 = vmatprep.subr.mxu0 0.0
    %779 = vmatpush1.msra.mxu0 0.0
    %780 = vmatprep.subr.mxu0 0.0
    %781 = vmatpush1.msra.mxu0 0.0
    %782 = vmatprep.subr.mxu0 0.0
    %783 = vmatpush1.msra.mxu0 0.0
    %784 = vmatprep.subr.mxu0 0.0
    %785 = vmatpush1.msra.mxu0 0.0
    %786 = vmatprep.subr.mxu0 0.0
    %787 = vmatpush1.msra.mxu0 0.0
    %788 = vmatprep.subr.mxu0 0.0
    %789 = vmatpush1.msra.mxu0 0.0
    %790 = vmatprep.subr.mxu0 0.0
    %791 = vmatpush1.msra.mxu0 0.0
    %792 = vmatprep.subr.mxu0 0.0
    %793 = vmatpush1.msra.mxu0 %v760
    %794 = vmatprep.subr.mxu0 0.0
    %795 = vmatpush1.msra.mxu0 %v759
    %796 = vmatprep.subr.mxu0 0.0
    %797 = vmatpush1.msra.mxu0 %v758
    %798 = vmatprep.subr.mxu0 0.0
    %799 = vmatpush1.msra.mxu0 %v757
    %800 = vmatprep.subr.mxu0 0.0
    %801 = vmatpush1.msra.mxu0 %v756
    %802 = vmatprep.subr.mxu0 0.0
    %803 = vmatpush1.msra.mxu0 %v755
    %804 = vmatprep.subr.mxu0 0.0
    %805 = vmatpush2.msra.mxu0 0.0
    %806 = vmatprep.subr.mxu0 0.0
    %807 = vmatpush2.msra.mxu0 0.0
    %808 = vmatprep.subr.mxu0 0.0
    %809 = vmatpush2.msra.mxu0 0.0
    %810 = vmatprep.subr.mxu0 0.0
    %811 = vmatpush2.msra.mxu0 0.0
    %812 = vmatprep.subr.mxu0 0.0
    %813 = vmatpush2.msra.mxu0 0.0
    %814 = vmatprep.subr.mxu0 0.0
    %815 = vmatpush2.msra.mxu0 0.0
    %816 = vmatprep.subr.mxu0 0.0
    %817 = vmatpush2.msra.mxu0 0.0
    %818 = vmatprep.subr.mxu0 0.0
    %819 = vmatpush2.msra.mxu0 0.0
    %820 = vmatprep.subr.mxu0 0.0
    %821 = vmatpush2.msra.mxu0 0.0
    %822 = vmatprep.subr.mxu0 0.0
    %823 = vmatpush2.msra.mxu0 0.0
    %824 = vmatprep.subr.mxu0 0.0
    %825 = vmatpush2.msra.mxu0 0.0
    %826 = vmatprep.subr.mxu0 0.0
    %827 = vmatpush2.msra.mxu0 0.0
    %828 = vmatprep.subr.mxu0 0.0
    %829 = vmatpush2.msra.mxu0 0.0
    %830 = vmatprep.subr.mxu0 0.0
    %831 = vmatpush2.msra.mxu0 0.0
    %832 = vmatprep.subr.mxu0 0.0
    %833 = vmatpush2.msra.mxu0 0.0
    %834 = vmatprep.subr.mxu0 0.0
    %835 = vmatpush2.msra.mxu0 0.0
    %836 = vmatprep.mubr.f32.mxu0 0.0
    %837 = vmatmul.mubr.f32.gmra.mxu0 %v770
    %v838 = vpop.f32.mrf.mxu0
    %v839 = vadd.f32 %v765, %v838
    %v840 = vpop.f32.mrf.mxu0
    %841 = vdwg.mxu0
    %v842 = vtanh.pop %v839
    %v843 = vld [vmem:[%s1 + $0x118] sm:$0xff]
    %v844 = vld [vmem:[%s1 + $0x120] sm:$0xff]
    %v845 = vld [vmem:[%s1 + $0x128] sm:$0xff]
    %v846 = vld [vmem:[%s1 + $0x130] sm:$0xff]
    %v847 = vld [vmem:[%s1 + $0xe2] sm:$0x1]
    %v848 = vlaneseq
    %v849 = vshrl.u32 %v848, 7
    %v850 = vsub.s32 0, %v849
    %v851 = vrot.slane %v847, %v850
    %v853 = vsel %vm167, %v842, 0
    %855 = vmatprep.subr.mxu0 0.0
    %856 = vmatpush1.msra.mxu0 0.0
    %857 = vmatprep.subr.mxu0 0.0
    %858 = vmatpush1.msra.mxu0 0.0
    %859 = vmatprep.subr.mxu0 0.0
    %860 = vmatpush1.msra.mxu0 0.0
    %861 = vmatprep.subr.mxu0 0.0
    %862 = vmatpush1.msra.mxu0 0.0
    %863 = vmatprep.subr.mxu0 0.0
    %864 = vmatpush1.msra.mxu0 0.0
    %865 = vmatprep.subr.mxu0 0.0
    %866 = vmatpush1.msra.mxu0 0.0
    %867 = vmatprep.subr.mxu0 0.0
    %868 = vmatpush1.msra.mxu0 0.0
    %869 = vmatprep.subr.mxu0 0.0
    %870 = vmatpush1.msra.mxu0 0.0
    %871 = vmatprep.subr.mxu0 0.0
    %872 = vmatpush1.msra.mxu0 0.0
    %873 = vmatprep.subr.mxu0 0.0
    %874 = vmatpush1.msra.mxu0 0.0
    %875 = vmatprep.subr.mxu0 0.0
    %876 = vmatpush1.msra.mxu0 0.0
    %877 = vmatprep.subr.mxu0 0.0
    %878 = vmatpush1.msra.mxu0 0.0
    %879 = vmatprep.subr.mxu0 0.0
    %880 = vmatpush1.msra.mxu0 %v846
    %881 = vmatprep.subr.mxu0 0.0
    %882 = vmatpush1.msra.mxu0 %v845
    %883 = vmatprep.subr.mxu0 0.0
    %884 = vmatpush1.msra.mxu0 %v844
    %885 = vmatprep.subr.mxu0 0.0
    %886 = vmatpush1.msra.mxu0 %v843
    %887 = vmatprep.subr.mxu0 0.0
    %888 = vmatpush2.msra.mxu0 0.0
    %889 = vmatprep.subr.mxu0 0.0
    %890 = vmatpush2.msra.mxu0 0.0
    %891 = vmatprep.subr.mxu0 0.0
    %892 = vmatpush2.msra.mxu0 0.0
    %893 = vmatprep.subr.mxu0 0.0
    %894 = vmatpush2.msra.mxu0 0.0
    %895 = vmatprep.subr.mxu0 0.0
    %896 = vmatpush2.msra.mxu0 0.0
    %897 = vmatprep.subr.mxu0 0.0
    %898 = vmatpush2.msra.mxu0 0.0
    %899 = vmatprep.subr.mxu0 0.0
    %900 = vmatpush2.msra.mxu0 0.0
    %901 = vmatprep.subr.mxu0 0.0
    %902 = vmatpush2.msra.mxu0 0.0
    %903 = vmatprep.subr.mxu0 0.0
    %904 = vmatpush2.msra.mxu0 0.0
    %905 = vmatprep.subr.mxu0 0.0
    %906 = vmatpush2.msra.mxu0 0.0
    %907 = vmatprep.subr.mxu0 0.0
    %908 = vmatpush2.msra.mxu0 0.0
    %909 = vmatprep.subr.mxu0 0.0
    %910 = vmatpush2.msra.mxu0 0.0
    %911 = vmatprep.subr.mxu0 0.0
    %912 = vmatpush2.msra.mxu0 0.0
    %913 = vmatprep.subr.mxu0 0.0
    %914 = vmatpush2.msra.mxu0 0.0
    %915 = vmatprep.subr.mxu0 0.0
    %916 = vmatpush2.msra.mxu0 0.0
    %917 = vmatprep.subr.mxu0 0.0
    %918 = vmatpush2.msra.mxu0 0.0
    %919 = vmatprep.mubr.f32.mxu0 0.0
    %920 = vmatmul.mubr.f32.gmra.mxu0 %v853
    %v921 = vpop.f32.mrf.mxu0
    %v922 = vadd.f32 %v851, %v921
    %v923 = vpop.f32.mrf.mxu0
    %924 = vdwg.mxu0
    %v925 = vmax.f32 %v922, 0.0
    %vm926 = vcmask 25600
    %927 = vst.msk [vmem:[#allocation2] sm:$0x3] %vm926, %v925
    // Predicated region
    $region10: #{tpu_custom_call.1} parent=1 // pred_check
      _
    $region11: #{tpu_custom_call.1} parent=1 // pred_check_branch
      %929 = sbr.rel (0) target = $region13
    $region12: #{tpu_custom_call.1} parent=1 // pred_region
      %s931 = ssub.s32 32, 32
      %932 = vsyncadd [#allocation3], %s931
      %s934 = sshll.u32 [#allocation2], 4
      %s935 = int_to_ptr.vmem [resolvable:$true] %s934
      %937 = dma.vmem_to_hbm [thread:$0]  %s935, 32, %s2, [#allocation3]
    $region13: #{tpu_custom_call.1} parent=1 // pred_fallthru
      _
    // Predicated region
    $region14: #{tpu_custom_call.1} parent=1 // pred_check
      _
    $region15: #{tpu_custom_call.1} parent=1 // pred_check_branch
      %939 = sbr.rel (0) target = $region17
    $region16: #{tpu_custom_call.1} parent=1 // pred_region
      %940 = dma.done [#allocation3], 32
    $region17: #{tpu_custom_call.1} parent=1 // pred_fallthru
      _
    %941 = vsyncpa [#allocation3], 1

</llo_original>
